<compile_context>
chip_gen: v7x
topology: tpu7x:2x2x1
jax: 0.10.0
libtpu: 0.0.40
codegen_flags: <defaults>
</compile_context>

<pallas_src>
import functools
import math

import jax
import jax.numpy as jnp
from jax.experimental import pallas as pl
from jax.experimental.pallas import tpu as pltpu


def _round_up(x, m):
    return (x + m - 1) // m * m


def _vmem_capacity_bytes():
    """Physical VMEM per TensorCore; conservative 64 MiB (v7x) fallback."""
    try:
        info = pltpu.get_tpu_info()
        cap = getattr(info, "vmem_capacity_bytes", None)
        if cap:
            return int(cap)
    except Exception:
        pass
    return 64 << 20


def _pick_tk(H, tk_pref):
    """Hidden-dim chunk: large (cuts accumulator RMW passes + per-step
    overhead), multiple of 128, H padded up to a multiple of it."""
    tk_pref = max(int(tk_pref), 128)
    h128 = _round_up(H, 128)
    if h128 <= tk_pref:          # single reduction step, no padding waste
        return h128
    for cand in (1024, 512, 256):
        if cand <= tk_pref and h128 % cand == 0:
            return cand
    return 128


def _select_tiles(E, H, x_bytes, w_bytes, out_bytes, *, tm_pref=512, tk_pref=512):
    """Pick (tm_cap, tk, e_p, h_p, vmem_limit) that fit this chip's VMEM."""
    e_p = _round_up(E, 128)
    vmem_cap = _vmem_capacity_bytes()
    budget = int(vmem_cap * 0.75)            # headroom for Mosaic scratch

    tm = max(int(tm_pref), 128)
    tk = _pick_tk(H, tk_pref)

    def footprint(tm_, tk_):
        return (2 * tm_ * e_p * x_bytes       # x tile, double-buffered (orig dtype)
                + 2 * e_p * tk_ * w_bytes     # W1 chunk
                + 2 * tk_ * e_p * w_bytes     # W2 chunk
                + 2 * 8 * tk_ * 4             # b1 (sublane-padded)
                + 2 * 8 * e_p * 4             # b2
                + 2 * tm_ * e_p * out_bytes   # out tile
                + tm_ * e_p * 4               # f32 accumulator
                + (2 << 20))                  # misc internal scratch

    # Shrink tk first (weight-reuse intensity scales with tm, keep tm big).
    while footprint(tm, tk) > budget and tk > 128:
        tk = max(128, (tk // 2) // 128 * 128)
    while footprint(tm, tk) > budget and tm > 128:
        tm = max(128, (tm // 2) // 8 * 8)

    h_p = _round_up(H, tk)
    vmem_limit = int(min(max(footprint(tm, tk) + (8 << 20), 32 << 20),
                         vmem_cap - (4 << 20)))
    return tm, tk, e_p, h_p, vmem_limit


def _ffn_kernel(x_ref, w1_ref, b1_ref, w2_ref, b2_ref, o_ref, acc_ref):
    """Grid = (row_tiles, H_chunks); acc_ref is a (tm, e_p) f32 accumulator."""
    k = pl.program_id(1)

    @pl.when(k == 0)
    def _init():
        # Fold b2 into the accumulator init (no extra add/read at finalize).
        acc_ref[...] = jnp.broadcast_to(b2_ref[...], acc_ref.shape)

    # Cast the activation block in VMEM; x stays in its input dtype in HBM.
    xb = x_ref[...].astype(w1_ref.dtype)

    # First Dense chunk: h_k = relu(x @ W1[:, chunk] + b1[chunk])  (f32 acc).
    h = jnp.dot(xb, w1_ref[...], preferred_element_type=jnp.float32)
    h = jnp.maximum(h + b1_ref[...], 0.0)              # b1 is (1, tk)

    # Second Dense chunk contribution, accumulated in f32.
    acc_ref[...] += jnp.dot(h.astype(w2_ref.dtype), w2_ref[...],
                            preferred_element_type=jnp.float32)

    @pl.when(k == pl.num_programs(1) - 1)
    def _finalize():
        # Dropout: eval-mode identity (matches PyTorch model.eval()).
        # TODO(synk): training-mode dropout would use pltpu.prng_seed +
        # pltpu.prng_random_bits for a Bernoulli mask; omitted (inference).
        o_ref[...] = acc_ref[...].astype(o_ref.dtype)


@functools.partial(jax.jit,
                   static_argnames=("tk", "tm_cap", "vmem_limit", "out_dtype"))
def _ffn_impl(x, w1p, b1p, w2p, b2p, *, tk, tm_cap, vmem_limit, out_dtype):
    orig_shape = x.shape
    E = orig_shape[-1]
    rows = math.prod(orig_shape[:-1])
    e_p, h_p = w1p.shape
    out_dtype = x.dtype if out_dtype is None else out_dtype

    # Row tile adapts to the actual row count (no 16x padding for tiny rows).
    tm = min(tm_cap, _round_up(rows, 8))
    rows_p = _round_up(rows, tm)

    x2d = x.reshape(rows, E)
    if rows_p != rows or e_p != E:
        x2d = jnp.pad(x2d, ((0, rows_p - rows), (0, e_p - E)))

    grid = (rows_p // tm, h_p // tk)
    n_row_tiles = grid[0]

    x_bytes = jnp.dtype(x.dtype).itemsize
    w_bytes = jnp.dtype(w1p.dtype).itemsize
    out_bytes = jnp.dtype(out_dtype).itemsize
    cost = pl.CostEstimate(
        flops=2 * 2 * rows_p * e_p * h_p,                    # two matmuls
        transcendentals=0,
        bytes_accessed=(rows_p * e_p * x_bytes               # x
                        + n_row_tiles * 2 * e_p * h_p * w_bytes  # W1+W2 per row tile
                        + (h_p + e_p) * 4                    # biases
                        + rows_p * e_p * out_bytes))         # out

    out2d = pl.pallas_call(
        _ffn_kernel,
        out_shape=jax.ShapeDtypeStruct((rows_p, e_p), out_dtype),
        grid_spec=pltpu.PrefetchScalarGridSpec(
            num_scalar_prefetch=0,
            grid=grid,
            in_specs=[
                pl.BlockSpec((tm, e_p), lambda i, k: (i, 0)),   # x row tile
                pl.BlockSpec((e_p, tk), lambda i, k: (0, k)),   # W1 H-chunk
                pl.BlockSpec((1, tk), lambda i, k: (0, k)),     # b1 H-chunk
                pl.BlockSpec((tk, e_p), lambda i, k: (k, 0)),   # W2 H-chunk
                pl.BlockSpec((1, e_p), lambda i, k: (0, 0)),    # b2 (resident)
            ],
            out_specs=pl.BlockSpec((tm, e_p), lambda i, k: (i, 0)),
            scratch_shapes=[pltpu.VMEM((tm, e_p), jnp.float32)],
        ),
        compiler_params=pltpu.CompilerParams(
            dimension_semantics=("parallel", "arbitrary"),
            vmem_limit_bytes=vmem_limit),
        cost_estimate=cost,
    )(x2d, w1p, b1p, w2p, b2p)

    return out2d[:rows, :E].reshape(orig_shape)


def prepare_params(w1, b1, w2, b2, *, compute_dtype=jnp.bfloat16,
                   x_dtype=jnp.float32, out_dtype=None,
                   tm_pref=512, tk_pref=512):
    """Pad weights to lane-aligned (e_p, h_p) and cast to the MXU compute
    dtype ONCE.  Re-doing this per forward call would re-stream O(E*H) weight
    bytes through HBM before the kernel even starts."""
    E, H = w1.shape
    x_bytes = jnp.dtype(x_dtype).itemsize
    w_bytes = jnp.dtype(compute_dtype).itemsize
    out_bytes = jnp.dtype(out_dtype if out_dtype is not None else x_dtype).itemsize

    tm_cap, tk, e_p, h_p, vmem_limit = _select_tiles(
        E, H, x_bytes, w_bytes, out_bytes, tm_pref=tm_pref, tk_pref=tk_pref)

    def pad2(a, r, c):
        if a.shape == (r, c):
            return a
        return jnp.pad(a, ((0, r - a.shape[0]), (0, c - a.shape[1])))

    # Zero padding is exact: padded W1 cols / b1 entries give relu(0)=0 hidden
    # units, padded W2 rows/cols and b2 entries contribute nothing.
    w1p = pad2(w1, e_p, h_p).astype(compute_dtype)
    w2p = pad2(w2, h_p, e_p).astype(compute_dtype)
    b1p = jnp.pad(b1, (0, h_p - H)).reshape(1, h_p).astype(jnp.float32)
    b2p = jnp.pad(b2, (0, e_p - E)).reshape(1, e_p).astype(jnp.float32)

    return {"w1": w1p, "b1": b1p, "w2": w2p, "b2": b2p,
            "tk": tk, "tm_cap": tm_cap, "vmem_limit": vmem_limit,
            "out_dtype": out_dtype}


def feed_forward_prepared(x, params):
    """Run the fused FFN with pre-prepared (padded, bf16) weights."""
    return _ffn_impl(x, params["w1"], params["b1"], params["w2"], params["b2"],
                     tk=params["tk"], tm_cap=params["tm_cap"],
                     vmem_limit=params["vmem_limit"],
                     out_dtype=params["out_dtype"])


def feed_forward(x, w1, b1, w2, b2, **kwargs):
    """One-shot convenience wrapper (re-prepares weights every call; prefer
    prepare_params + feed_forward_prepared for repeated calls)."""
    params = prepare_params(w1, b1, w2, b2, x_dtype=x.dtype, **kwargs)
    return feed_forward_prepared(x, params)


def _init_params(key, embed_dim, hidden_dim, dtype=jnp.float32):
    """Deterministic nn.Linear-style init (uniform +/- 1/sqrt(fan_in))."""
    k1, k2, k3, k4 = jax.random.split(key, 4)
    lim1 = 1.0 / (embed_dim ** 0.5)
    lim2 = 1.0 / (hidden_dim ** 0.5)
    w1 = jax.random.uniform(k1, (embed_dim, hidden_dim), dtype, -lim1, lim1)
    b1 = jax.random.uniform(k2, (hidden_dim,), dtype, -lim1, lim1)
    w2 = jax.random.uniform(k3, (hidden_dim, embed_dim), dtype, -lim2, lim2)
    b2 = jax.random.uniform(k4, (embed_dim,), dtype, -lim2, lim2)
    return w1, b1, w2, b2


if __name__ == "__main__":
    key = jax.random.PRNGKey(0)
    kx, kp = jax.random.split(key)

    batch, seq, embed_dim, hidden_dim = 2, 8, 32, 64
    x = jax.random.normal(kx, (batch, seq, embed_dim), jnp.float32)
    w1, b1, w2, b2 = _init_params(kp, embed_dim, hidden_dim)

    # Weight prep hoisted out of the per-call path.
    params = prepare_params(w1, b1, w2, b2, x_dtype=x.dtype)
    out = feed_forward_prepared(x, params)
    out = jax.block_until_ready(out)
    assert out.shape == (batch, seq, embed_dim)
    assert out.dtype == x.dtype

    # Reference with matching bf16-operand / f32-accumulation numerics.
    bf = jnp.bfloat16
    h_ref = jnp.dot(x.astype(bf), w1.astype(bf),
                    preferred_element_type=jnp.float32) + b1
    h_ref = jnp.maximum(h_ref, 0.0)
    ref_bf = jnp.dot(h_ref.astype(bf), w2.astype(bf),
                     preferred_element_type=jnp.float32) + b2
    assert jnp.allclose(out, ref_bf, atol=2e-3, rtol=2e-3)

    # Loose sanity check against the full-f32 reference (bf16 rounding only).
    ref_f32 = jnp.maximum(x @ w1 + b1, 0.0) @ w2 + b2
    assert jnp.allclose(out, ref_f32, atol=5e-2, rtol=5e-2)

    print("KERNEL_OK")
</pallas_src>

<mosaic_0001>
module attributes {stable_mosaic.version = 11 : i64} {
  func.func @_ffn_kernel(%arg0: i32, %arg1: i32, %arg2: memref<16x128xf32, #tpu.memory_space<vmem>>, %arg3: memref<128x128xbf16, #tpu.memory_space<vmem>>, %arg4: memref<1x128xf32, #tpu.memory_space<vmem>>, %arg5: memref<128x128xbf16, #tpu.memory_space<vmem>>, %arg6: memref<1x128xf32, #tpu.memory_space<vmem>>, %arg7: memref<16x128xf32, #tpu.memory_space<vmem>>, %arg8: memref<16x128xf32, #tpu.memory_space<vmem>>) attributes {dimension_semantics = [#tpu.dimension_semantics<parallel>, #tpu.dimension_semantics<arbitrary>], iteration_bounds = array<i64: 1, 1>, scalar_prefetch = 0 : i64, scratch_operands = 1 : i64, tpu.core_type = #tpu.core_type<tc>, window_params = [{transform_indices = @transform_0, window_bounds = array<i64: 16, 128>}, {transform_indices = @transform_1, window_bounds = array<i64: 128, 128>}, {transform_indices = @transform_2, window_bounds = array<i64: 1, 128>}, {transform_indices = @transform_3, window_bounds = array<i64: 128, 128>}, {pipeline_mode = #tpu.pipeline_mode<synchronous>, transform_indices = @transform_4, window_bounds = array<i64: 1, 128>}, {transform_indices = @transform_5, window_bounds = array<i64: 16, 128>}]} {
    %c0_i32 = arith.constant 0 : i32
    %0 = arith.cmpi eq, %arg1, %c0_i32 : i32
    %1 = arith.extui %0 : i1 to i32
    %c0_i32_0 = arith.constant 0 : i32
    %2 = arith.cmpi ne, %1, %c0_i32_0 : i32
    scf.if %2 {
      %c0_16 = arith.constant 0 : index
      %c0_17 = arith.constant 0 : index
      %21 = vector.load %arg6[%c0_16, %c0_17] : memref<1x128xf32, #tpu.memory_space<vmem>>, vector<1x128xf32>
      %22 = vector.shape_cast %21 : vector<1x128xf32> to vector<1x128xf32>
      %23 = vector.broadcast %22 : vector<1x128xf32> to vector<16x128xf32>
      %c0_18 = arith.constant 0 : index
      %c0_19 = arith.constant 0 : index
      %24 = vector.load %arg8[%c0_18, %c0_19] : memref<16x128xf32, #tpu.memory_space<vmem>>, vector<16x128xf32>
      tpu.vector_store %arg8[%c0_18, %c0_19], %23 {strides = array<i32>} : memref<16x128xf32, #tpu.memory_space<vmem>>, vector<16x128xf32>,
    } else {
    }
    %c0 = arith.constant 0 : index
    %c0_1 = arith.constant 0 : index
    %3 = vector.load %arg2[%c0, %c0_1] : memref<16x128xf32, #tpu.memory_space<vmem>>, vector<16x128xf32>
    %4 = arith.truncf %3 : vector<16x128xf32> to vector<16x128xbf16>
    %c0_2 = arith.constant 0 : index
    %c0_3 = arith.constant 0 : index
    %5 = vector.load %arg3[%c0_2, %c0_3] : memref<128x128xbf16, #tpu.memory_space<vmem>>, vector<128x128xbf16>
    %cst = arith.constant dense<0.000000e+00> : vector<16x128xf32>
    %6 = tpu.matmul %4, %5, %cst {dimension_numbers = #tpu.dot_dimension_numbers<[1], [0], [0], [1], [0, 0, 1, 1], [], []>} : vector<16x128xbf16>, vector<128x128xbf16>, vector<16x128xf32> -> vector<16x128xf32>
    %c0_4 = arith.constant 0 : index
    %c0_5 = arith.constant 0 : index
    %7 = vector.load %arg4[%c0_4, %c0_5] : memref<1x128xf32, #tpu.memory_space<vmem>>, vector<1x128xf32>
    %8 = vector.broadcast %7 : vector<1x128xf32> to vector<16x128xf32>
    %9 = arith.addf %6, %8 : vector<16x128xf32>
    %cst_6 = arith.constant 0.000000e+00 : f32
    %10 = vector.broadcast %cst_6 : f32 to vector<16x128xf32>
    %11 = arith.maximumf %9, %10 : vector<16x128xf32>
    %c0_7 = arith.constant 0 : index
    %c0_8 = arith.constant 0 : index
    %12 = vector.load %arg8[%c0_7, %c0_8] : memref<16x128xf32, #tpu.memory_space<vmem>>, vector<16x128xf32>
    %13 = arith.truncf %11 : vector<16x128xf32> to vector<16x128xbf16>
    %c0_9 = arith.constant 0 : index
    %c0_10 = arith.constant 0 : index
    %14 = vector.load %arg5[%c0_9, %c0_10] : memref<128x128xbf16, #tpu.memory_space<vmem>>, vector<128x128xbf16>
    %cst_11 = arith.constant dense<0.000000e+00> : vector<16x128xf32>
    %15 = tpu.matmul %13, %14, %cst_11 {dimension_numbers = #tpu.dot_dimension_numbers<[1], [0], [0], [1], [0, 0, 1, 1], [], []>} : vector<16x128xbf16>, vector<128x128xbf16>, vector<16x128xf32> -> vector<16x128xf32>
    %16 = arith.addf %12, %15 : vector<16x128xf32>
    %c0_12 = arith.constant 0 : index
    %c0_13 = arith.constant 0 : index
    %17 = vector.load %arg8[%c0_12, %c0_13] : memref<16x128xf32, #tpu.memory_space<vmem>>, vector<16x128xf32>
    tpu.vector_store %arg8[%c0_12, %c0_13], %16 {strides = array<i32>} : memref<16x128xf32, #tpu.memory_space<vmem>>, vector<16x128xf32>,
    %c0_i32_14 = arith.constant 0 : i32
    %18 = arith.cmpi eq, %arg1, %c0_i32_14 : i32
    %19 = arith.extui %18 : i1 to i32
    %c0_i32_15 = arith.constant 0 : i32
    %20 = arith.cmpi ne, %19, %c0_i32_15 : i32
    scf.if %20 {
      %c0_16 = arith.constant 0 : index
      %c0_17 = arith.constant 0 : index
      %21 = vector.load %arg8[%c0_16, %c0_17] : memref<16x128xf32, #tpu.memory_space<vmem>>, vector<16x128xf32>
      %c0_18 = arith.constant 0 : index
      %c0_19 = arith.constant 0 : index
      %22 = vector.load %arg7[%c0_18, %c0_19] : memref<16x128xf32, #tpu.memory_space<vmem>>, vector<16x128xf32>
      tpu.vector_store %arg7[%c0_18, %c0_19], %21 {strides = array<i32>} : memref<16x128xf32, #tpu.memory_space<vmem>>, vector<16x128xf32>,
    } else {
    }
    return
  }
  func.func @transform_0(%arg0: i32, %arg1: i32) -> (i32, i32) {
    %c0_i32 = arith.constant 0 : i32
    %c0_i32_0 = arith.constant 0 : i32
    return %arg0, %c0_i32 : i32, i32
  }
  func.func @transform_1(%arg0: i32, %arg1: i32) -> (i32, i32) {
    %c0_i32 = arith.constant 0 : i32
    %c0_i32_0 = arith.constant 0 : i32
    return %c0_i32, %arg1 : i32, i32
  }
  func.func @transform_2(%arg0: i32, %arg1: i32) -> (i32, i32) {
    %c0_i32 = arith.constant 0 : i32
    %c0_i32_0 = arith.constant 0 : i32
    return %c0_i32, %arg1 : i32, i32
  }
  func.func @transform_3(%arg0: i32, %arg1: i32) -> (i32, i32) {
    %c0_i32 = arith.constant 0 : i32
    %c0_i32_0 = arith.constant 0 : i32
    return %arg1, %c0_i32 : i32, i32
  }
  func.func @transform_4(%arg0: i32, %arg1: i32) -> (i32, i32) {
    %c0_i32 = arith.constant 0 : i32
    %c0_i32_0 = arith.constant 0 : i32
    %c0_i32_1 = arith.constant 0 : i32
    return %c0_i32, %c0_i32_0 : i32, i32
  }
  func.func @transform_5(%arg0: i32, %arg1: i32) -> (i32, i32) {
    %c0_i32 = arith.constant 0 : i32
    %c0_i32_0 = arith.constant 0 : i32
    return %arg0, %c0_i32 : i32, i32
  }
}

</mosaic_0001>

<llo_original>
// kernel: _ffn_impl.1
$region0: #{_ffn_impl.1}
  #allocation0 [shape = 'u32[]', space=smem, size = 0x4, offset = 0x4, fixed_abs, tag = 'smem constant byte address 0x4 - core index']
  #allocation1 [shape = 'u32[144,128]{1,0:T(1,128)}', space=vmem, size = 0x12000, scoped, tag = 'internal scratch']
  #allocation2 [shape = 'f32[16,128]{1,0:T(8,128)}', space=vmem, size = 0x2000, scoped, tag = 'scratch operand']
  %s0 = inlined_call_operand.vmem [shape: f32[16,128], index: 0, kind: input, shape index: {}]
  %s1 = inlined_call_operand.hbm [shape: bf16[128,128], index: 1, kind: input, shape index: {}]
  %s2 = inlined_call_operand.vmem [shape: f32[1,128], index: 2, kind: input, shape index: {}]
  %s3 = inlined_call_operand.hbm [shape: bf16[128,128], index: 3, kind: input, shape index: {}]
  %s4 = inlined_call_operand.vmem [shape: f32[1,128], index: 4, kind: input, shape index: {}]
  %s5 = inlined_call_operand.vmem [shape: f32[16,128], index: 5, kind: output, shape index: {}]
  %s6 = sld [smem:[#allocation0]]
  $region46: #{_ffn_impl.1} parent=0
    _
  %s8 = ssub.s32 1, %s6
  %s9 = scalar_select 0, %s8, %s6
  $region1: #{_ffn_impl.1} parent=0
    #allocation3 [shape = 'u8[32768]{0}', space=vmem, size = 0x8000, scoped, tag = 'input window, operand 1, single buffered']
    #allocation4 [shape = 's32[1]{0}', space=sflag, size = 0x4, scoped, tag = 'scoped memory for _ffn_impl.1']
    #allocation5 [shape = 'u8[32768]{0}', space=vmem, size = 0x8000, scoped, tag = 'input window, operand 3, single buffered']
    #allocation6 [shape = 's32[1]{0}', space=sflag, size = 0x4, scoped, tag = 'scoped memory for _ffn_impl.1']
    %10 = vsyncpa [#allocation4], 0
    %11 = vsyncpa [#allocation6], 0
    // Predicated region
    $region2: #{_ffn_impl.1} parent=1 // pred_check
      _
    $region3: #{_ffn_impl.1} parent=1 // pred_check_branch
      %13 = sbr.rel (0) target = $region5
    $region4: #{_ffn_impl.1} parent=1 // pred_region
      _
    $region5: #{_ffn_impl.1} parent=1 // pred_fallthru
      _
    // Predicated region
    $region6: #{_ffn_impl.1} parent=1 // pred_check
      _
    $region7: #{_ffn_impl.1} parent=1 // pred_check_branch
      %15 = sbr.rel (0) target = $region9
    $region8: #{_ffn_impl.1} parent=1 // pred_region
      %s17 = ssub.s32 1024, 1024
      %18 = vsyncadd [#allocation4], %s17
      %s19 = sshll.u32 [#allocation3], 4
      %s20 = int_to_ptr.vmem [resolvable:$true] %s19
      %25 = dma.hbm_to_vmem [thread:$0]  %s1, 1024, %s20, [#allocation4], 64, 64, 4
    $region9: #{_ffn_impl.1} parent=1 // pred_fallthru
      _
    // Predicated region
    $region10: #{_ffn_impl.1} parent=1 // pred_check
      _
    $region11: #{_ffn_impl.1} parent=1 // pred_check_branch
      %27 = sbr.rel (0) target = $region13
    $region12: #{_ffn_impl.1} parent=1 // pred_region
      _
    $region13: #{_ffn_impl.1} parent=1 // pred_fallthru
      _
    // Predicated region
    $region14: #{_ffn_impl.1} parent=1 // pred_check
      _
    $region15: #{_ffn_impl.1} parent=1 // pred_check_branch
      %29 = sbr.rel (0) target = $region17
    $region16: #{_ffn_impl.1} parent=1 // pred_region
      %s31 = ssub.s32 1024, 1024
      %32 = vsyncadd [#allocation6], %s31
      %s33 = sshll.u32 [#allocation5], 4
      %s34 = int_to_ptr.vmem [resolvable:$true] %s33
      %39 = dma.hbm_to_vmem [thread:$0]  %s3, 1024, %s34, [#allocation6], 64, 64, 4
    $region17: #{_ffn_impl.1} parent=1 // pred_fallthru
      _
    // Predicated region
    $region18: #{_ffn_impl.1} parent=1 // pred_check
      _
    $region19: #{_ffn_impl.1} parent=1 // pred_check_branch
      %41 = sbr.rel (0) target = $region21
    $region20: #{_ffn_impl.1} parent=1 // pred_region
      _
    $region21: #{_ffn_impl.1} parent=1 // pred_fallthru
      _
    // Predicated region
    $region22: #{_ffn_impl.1} parent=1 // pred_check
      _
    $region23: #{_ffn_impl.1} parent=1 // pred_check_branch
      %43 = sbr.rel (0) target = $region25
    $region24: #{_ffn_impl.1} parent=1 // pred_region
      %44 = dma.done [#allocation4], 1024
    $region25: #{_ffn_impl.1} parent=1 // pred_fallthru
      _
    // Predicated region
    $region26: #{_ffn_impl.1} parent=1 // pred_check
      _
    $region27: #{_ffn_impl.1} parent=1 // pred_check_branch
      %46 = sbr.rel (0) target = $region29
    $region28: #{_ffn_impl.1} parent=1 // pred_region
      %47 = dma.done [#allocation6], 1024
    $region29: #{_ffn_impl.1} parent=1 // pred_fallthru
      _
    %p49 = scmp.eq.s32.totalorder 0, 0
    // Predicated region
    $region30: #{_ffn_impl.1} parent=1 // pred_check
      %p50 = pneg %p49
    $region31: #{_ffn_impl.1} parent=1 // pred_check_branch
      %52 = sbr.rel (%p50) target = $region33
    $region32: #{_ffn_impl.1} parent=1 // pred_region
      %v53 = vld [vmem:[%s4] sm:$0x1]
      %v55 = vlaneseq
      %v56 = vshrl.u32 %v55, 7
      %v57 = vsub.s32 0, %v56
      %v58 = vrot.slane %v53, %v57
      %60 = vst [vmem:[#allocation2] sm:$0xff] %v58
      %61 = vst [vmem:[#allocation2 + $0x8] sm:$0xff] %v58
    $region33: #{_ffn_impl.1} parent=1 // pred_fallthru
      _
    %v62 = vld [vmem:[%s0] sm:$0xff]
    %v63 = vld [vmem:[%s0 + $0x8] sm:$0xff]
    %v64 = vpack.c.bf16 %v63, %v62
    %v65 = vld [vmem:[#allocation3] sm:$0xf]
    %v66 = vld [vmem:[#allocation3 + $0x4] sm:$0xf]
    %v67 = vld [vmem:[#allocation3 + $0x8] sm:$0xf]
    %v68 = vld [vmem:[#allocation3 + $0xc] sm:$0xf]
    %v69 = vld [vmem:[#allocation3 + $0x10] sm:$0xf]
    %v70 = vld [vmem:[#allocation3 + $0x14] sm:$0xf]
    %v71 = vld [vmem:[#allocation3 + $0x18] sm:$0xf]
    %v72 = vld [vmem:[#allocation3 + $0x1c] sm:$0xf]
    %v73 = vld [vmem:[#allocation3 + $0x20] sm:$0xf]
    %v74 = vld [vmem:[#allocation3 + $0x24] sm:$0xf]
    %v75 = vld [vmem:[#allocation3 + $0x28] sm:$0xf]
    %v76 = vld [vmem:[#allocation3 + $0x2c] sm:$0xf]
    %v77 = vld [vmem:[#allocation3 + $0x30] sm:$0xf]
    %v78 = vld [vmem:[#allocation3 + $0x34] sm:$0xf]
    %v79 = vld [vmem:[#allocation3 + $0x38] sm:$0xf]
    %v80 = vld [vmem:[#allocation3 + $0x3c] sm:$0xf]
    %v81 = vld [vmem:[%s2] sm:$0x1]
    %v83 = vlaneseq
    %v84 = vshrl.u32 %v83, 7
    %v85 = vsub.s32 0, %v84
    %v86 = vrot.slane %v81, %v85
    %v104 = vunpack.c.l.b16 %v65
    %v105 = vunpack.c.l.b16 %v66
    %v106 = vunpack.c.l.b16 %v67
    %v107 = vunpack.c.l.b16 %v68
    %v108 = vunpack.c.l.b16 %v69
    %v109 = vunpack.c.l.b16 %v70
    %v110 = vunpack.c.l.b16 %v71
    %v111 = vunpack.c.l.b16 %v72
    %v112 = vunpack.c.l.b16 %v73
    %v113 = vunpack.c.l.b16 %v74
    %v114 = vunpack.c.l.b16 %v75
    %v115 = vunpack.c.l.b16 %v76
    %v116 = vunpack.c.l.b16 %v77
    %v117 = vunpack.c.l.b16 %v78
    %v118 = vunpack.c.l.b16 %v79
    %v119 = vunpack.c.l.b16 %v80
    %v120 = vpack.c.b16 %v105, %v104
    %v121 = vpack.c.b16 %v107, %v106
    %v122 = vpack.c.b16 %v109, %v108
    %v123 = vpack.c.b16 %v111, %v110
    %v124 = vpack.c.b16 %v113, %v112
    %v125 = vpack.c.b16 %v115, %v114
    %v126 = vpack.c.b16 %v117, %v116
    %v127 = vpack.c.b16 %v119, %v118
    %136 = vmatprep.subr.bf16.mxu0 0
    %137 = vmatpush1.bf16.msra.mxu0 %v120
    %138 = vmatprep.subr.bf16.mxu0 0
    %139 = vmatpush1.bf16.msra.mxu0 %v121
    %140 = vmatprep.subr.bf16.mxu0 0
    %141 = vmatpush1.bf16.msra.mxu0 %v122
    %142 = vmatprep.subr.bf16.mxu0 0
    %143 = vmatpush1.bf16.msra.mxu0 %v123
    %144 = vmatprep.subr.bf16.mxu0 0
    %145 = vmatpush1.bf16.msra.mxu0 %v124
    %146 = vmatprep.subr.bf16.mxu0 0
    %147 = vmatpush1.bf16.msra.mxu0 %v125
    %148 = vmatprep.subr.bf16.mxu0 0
    %149 = vmatpush1.bf16.msra.mxu0 %v126
    %150 = vmatprep.subr.bf16.mxu0 0
    %151 = vmatpush1.bf16.msra.mxu0 %v127
    %152 = vmatprep.subr.bf16.mxu0 0
    %153 = vmatpush1.bf16.msra.mxu0 0
    %154 = vmatprep.subr.bf16.mxu0 0
    %155 = vmatpush1.bf16.msra.mxu0 0
    %156 = vmatprep.subr.bf16.mxu0 0
    %157 = vmatpush1.bf16.msra.mxu0 0
    %158 = vmatprep.subr.bf16.mxu0 0
    %159 = vmatpush1.bf16.msra.mxu0 0
    %160 = vmatprep.subr.bf16.mxu0 0
    %161 = vmatpush1.bf16.msra.mxu0 0
    %162 = vmatprep.subr.bf16.mxu0 0
    %163 = vmatpush1.bf16.msra.mxu0 0
    %164 = vmatprep.subr.bf16.mxu0 0
    %165 = vmatpush1.bf16.msra.mxu0 0
    %166 = vmatprep.subr.bf16.mxu0 0
    %167 = vmatpush1.bf16.msra.mxu0 0
    %168 = vmatprep.mubr.bf16.mxu0 0
    %169 = vmatmul.mubr.bf16.gmra.mrb[0].mxu0 %v64
    %v170 = vpop.f32.mrb[0].mxu0
    %v171 = vadd.f32 %v86, %v170
    %v172 = vpop.f32.mrb[0].mxu0
    %v173 = vpop.f32.mrb[0].mxu0
    %v174 = vadd.f32 %v86, %v173
    %v175 = vpop.f32.mrb[0].mxu0
    %176 = vdwg.mxu0
    %v177 = vmax.f32 %v171, 0.0
    %v178 = vmax.f32 %v174, 0.0
    %v179 = vld [vmem:[#allocation2] sm:$0xff]
    %v180 = vld [vmem:[#allocation2 + $0x8] sm:$0xff]
    %v181 = vpack.c.bf16 %v178, %v177
    %v182 = vld [vmem:[#allocation5] sm:$0xf]
    %v183 = vld [vmem:[#allocation5 + $0x4] sm:$0xf]
    %v184 = vld [vmem:[#allocation5 + $0x8] sm:$0xf]
    %v185 = vld [vmem:[#allocation5 + $0xc] sm:$0xf]
    %v186 = vld [vmem:[#allocation5 + $0x10] sm:$0xf]
    %v187 = vld [vmem:[#allocation5 + $0x14] sm:$0xf]
    %v188 = vld [vmem:[#allocation5 + $0x18] sm:$0xf]
    %v189 = vld [vmem:[#allocation5 + $0x1c] sm:$0xf]
    %v190 = vld [vmem:[#allocation5 + $0x20] sm:$0xf]
    %v191 = vld [vmem:[#allocation5 + $0x24] sm:$0xf]
    %v192 = vld [vmem:[#allocation5 + $0x28] sm:$0xf]
    %v193 = vld [vmem:[#allocation5 + $0x2c] sm:$0xf]
    %v194 = vld [vmem:[#allocation5 + $0x30] sm:$0xf]
    %v195 = vld [vmem:[#allocation5 + $0x34] sm:$0xf]
    %v196 = vld [vmem:[#allocation5 + $0x38] sm:$0xf]
    %v197 = vld [vmem:[#allocation5 + $0x3c] sm:$0xf]
    %v214 = vunpack.c.l.b16 %v182
    %v215 = vunpack.c.l.b16 %v183
    %v216 = vunpack.c.l.b16 %v184
    %v217 = vunpack.c.l.b16 %v185
    %v218 = vunpack.c.l.b16 %v186
    %v219 = vunpack.c.l.b16 %v187
    %v220 = vunpack.c.l.b16 %v188
    %v221 = vunpack.c.l.b16 %v189
    %v222 = vunpack.c.l.b16 %v190
    %v223 = vunpack.c.l.b16 %v191
    %v224 = vunpack.c.l.b16 %v192
    %v225 = vunpack.c.l.b16 %v193
    %v226 = vunpack.c.l.b16 %v194
    %v227 = vunpack.c.l.b16 %v195
    %v228 = vunpack.c.l.b16 %v196
    %v229 = vunpack.c.l.b16 %v197
    %v230 = vpack.c.b16 %v215, %v214
    %v231 = vpack.c.b16 %v217, %v216
    %v232 = vpack.c.b16 %v219, %v218
    %v233 = vpack.c.b16 %v221, %v220
    %v234 = vpack.c.b16 %v223, %v222
    %v235 = vpack.c.b16 %v225, %v224
    %v236 = vpack.c.b16 %v227, %v226
    %v237 = vpack.c.b16 %v229, %v228
    %246 = vmatprep.subr.bf16.mxu0 0
    %247 = vmatpush1.bf16.msra.mxu0 %v230
    %248 = vmatprep.subr.bf16.mxu0 0
    %249 = vmatpush1.bf16.msra.mxu0 %v231
    %250 = vmatprep.subr.bf16.mxu0 0
    %251 = vmatpush1.bf16.msra.mxu0 %v232
    %252 = vmatprep.subr.bf16.mxu0 0
    %253 = vmatpush1.bf16.msra.mxu0 %v233
    %254 = vmatprep.subr.bf16.mxu0 0
    %255 = vmatpush1.bf16.msra.mxu0 %v234
    %256 = vmatprep.subr.bf16.mxu0 0
    %257 = vmatpush1.bf16.msra.mxu0 %v235
    %258 = vmatprep.subr.bf16.mxu0 0
    %259 = vmatpush1.bf16.msra.mxu0 %v236
    %260 = vmatprep.subr.bf16.mxu0 0
    %261 = vmatpush1.bf16.msra.mxu0 %v237
    %262 = vmatprep.subr.bf16.mxu0 0
    %263 = vmatpush1.bf16.msra.mxu0 0
    %264 = vmatprep.subr.bf16.mxu0 0
    %265 = vmatpush1.bf16.msra.mxu0 0
    %266 = vmatprep.subr.bf16.mxu0 0
    %267 = vmatpush1.bf16.msra.mxu0 0
    %268 = vmatprep.subr.bf16.mxu0 0
    %269 = vmatpush1.bf16.msra.mxu0 0
    %270 = vmatprep.subr.bf16.mxu0 0
    %271 = vmatpush1.bf16.msra.mxu0 0
    %272 = vmatprep.subr.bf16.mxu0 0
    %273 = vmatpush1.bf16.msra.mxu0 0
    %274 = vmatprep.subr.bf16.mxu0 0
    %275 = vmatpush1.bf16.msra.mxu0 0
    %276 = vmatprep.subr.bf16.mxu0 0
    %277 = vmatpush1.bf16.msra.mxu0 0
    %278 = vmatprep.mubr.bf16.mxu0 0
    %279 = vmatmul.mubr.bf16.gmra.mrb[0].mxu0 %v181
    %v280 = vpop.f32.mrb[0].mxu0
    %v281 = vadd.f32 0.0, %v280
    %v282 = vpop.f32.mrb[0].mxu0
    %v283 = vpop.f32.mrb[0].mxu0
    %v284 = vadd.f32 0.0, %v283
    %v285 = vpop.f32.mrb[0].mxu0
    %286 = vdwg.mxu0
    %v287 = vadd.f32 %v179, %v281
    %v288 = vadd.f32 %v180, %v284
    %289 = vst [vmem:[#allocation2] sm:$0xff] %v287
    %290 = vst [vmem:[#allocation2 + $0x8] sm:$0xff] %v288
    // Predicated region
    $region34: #{_ffn_impl.1} parent=1 // pred_check
      %p291 = pneg %p49
    $region35: #{_ffn_impl.1} parent=1 // pred_check_branch
      %293 = sbr.rel (%p291) target = $region37
    $region36: #{_ffn_impl.1} parent=1 // pred_region
      %v294 = vld [vmem:[#allocation2] sm:$0xff]
      %v295 = vld [vmem:[#allocation2 + $0x8] sm:$0xff]
      %296 = vst [vmem:[%s5] sm:$0xff] %v294
      %297 = vst [vmem:[%s5 + $0x8] sm:$0xff] %v295
    $region37: #{_ffn_impl.1} parent=1 // pred_fallthru
      _
    // Predicated region
    $region38: #{_ffn_impl.1} parent=1 // pred_check
      _
    $region39: #{_ffn_impl.1} parent=1 // pred_check_branch
      %299 = sbr.rel (0) target = $region41
    $region40: #{_ffn_impl.1} parent=1 // pred_region
      _
    $region41: #{_ffn_impl.1} parent=1 // pred_fallthru
      _
    // Predicated region
    $region42: #{_ffn_impl.1} parent=1 // pred_check
      _
    $region43: #{_ffn_impl.1} parent=1 // pred_check_branch
      %301 = sbr.rel (0) target = $region45
    $region44: #{_ffn_impl.1} parent=1 // pred_region
      _
    $region45: #{_ffn_impl.1} parent=1 // pred_fallthru
      _
    %302 = vsyncpa [#allocation4], 1
    %303 = vsyncpa [#allocation6], 1

</llo_original>
